<compile_context>
chip_gen: v7x
topology: tpu7x:2x2x1
jax: 0.10.0
libtpu: 0.0.40
codegen_flags: <defaults>
</compile_context>

<pallas_src>
import functools
import math

import jax
import jax.numpy as jnp
import numpy as np
from jax.experimental import pallas as pl
from jax.experimental.pallas import tpu as pltpu

_EPS_F32 = 1e-7          # manifold.eps[torch.float32]
_MIN_NORM = 1e-15        # manifold.min_norm
_MAX_PACK_LANES = 512    # cap on the packed lane width (S is (L, L))
_SUB_TILE_BYTES = 256 * 1024   # f32 working-slab size inside the kernel


def _round_up(a, b):
    return (a + b - 1) // b * b


def _choose_packing(d):
    """(points per row g, packed lane width L=g*d), L a multiple of 128 if possible."""
    lanes = d * 128 // math.gcd(d, 128)          # lcm(d, 128)
    if lanes <= _MAX_PACK_LANES:
        return lanes // d, lanes
    return 1, d                                   # fallback: one point per row


def _device_config():
    """(block_bytes, vmem_limit_bytes) tuned per TPU generation."""
    try:
        kind = jax.devices()[0].device_kind.lower()
    except Exception:
        kind = ""
    small_vmem = any(t in kind for t in ("v2", "v3", "v5 lite", "v5e", "v5litepod"))
    if small_vmem:
        return 1 << 20, 16 << 20   # v5e-class: 1 MiB blocks, 16 MiB scoped VMEM
    return 4 << 20, 32 << 20       # v6e / v7x: 4 MiB blocks, 32 MiB scoped VMEM


def _segment_sum_matrix(d, lanes):
    """(lanes, lanes) 0/1 block-diagonal: col b sums the spatial lanes of b's point."""
    idx = np.arange(lanes)
    seg = idx // d
    spatial = (idx % d) != 0                      # time rows zeroed == proj_tan0
    s = (seg[:, None] == seg[None, :]) & spatial[:, None]
    return jnp.asarray(s.astype(np.float32), dtype=jnp.bfloat16)   # 0/1 exact in bf16


def _to_lorentz_packed_kernel(s_ref, x_ref, o_ref, *, c, d, sub_rows):
    """Block is (rows, lanes) with lanes = g*d: g points packed per row."""
    K = 1.0 / c
    sqrt_k = K ** 0.5
    inv_sqrt_k = 1.0 / sqrt_k
    half_sqrt_k = 0.5 * sqrt_k
    lanes = x_ref.shape[1]
    n_sub = x_ref.shape[0] // sub_rows

    lane = jax.lax.broadcasted_iota(jnp.int32, (1, lanes), 1)
    is_time = (lane % d) == 0                     # lane-only mask, broadcast at the end
    s = s_ref[...]                                # (lanes, lanes) bf16, stays resident

    def body(i, carry):
        r0 = pl.multiple_of(i * sub_rows, sub_rows)
        rows = pl.ds(r0, sub_rows)
        x = x_ref[rows, :].astype(jnp.float32)
        sq = x * x

        # Per-point squared spatial norm via one MXU segment-sum. sq is split
        # into three bf16 terms so nsq is f32-exact (S is 0/1 => products are
        # exact; only the ~2^-27 split residual is lost).
        hi = sq.astype(jnp.bfloat16)
        r1 = sq - hi.astype(jnp.float32)
        mid = r1.astype(jnp.bfloat16)
        lo = (r1 - mid.astype(jnp.float32)).astype(jnp.bfloat16)
        nsq = (jnp.dot(hi, s, preferred_element_type=jnp.float32)
               + jnp.dot(mid, s, preferred_element_type=jnp.float32)
               + jnp.dot(lo, s, preferred_element_type=jnp.float32))

        # expmap0 + proj fused: n = max(||u_spatial||, 1e-15), theta = n/sqrtK,
        # spatial = sqrtK*sinh(theta)*u/n, time = sqrtK*cosh(theta) (c <= 1e7).
        inv_n = jax.lax.rsqrt(jnp.maximum(nsq, _MIN_NORM * _MIN_NORM))
        n = nsq * inv_n
        theta = n * inv_sqrt_k
        e = jnp.exp(theta)
        ei = jnp.exp(-theta)
        t = half_sqrt_k * (e + ei)                          # sqrtK*cosh(theta)
        spatial = ((half_sqrt_k * (e - ei)) * inv_n) * x    # time lanes replaced below
        o_ref[rows, :] = jnp.where(is_time, t, spatial).astype(o_ref.dtype)
        return carry

    jax.lax.fori_loop(0, n_sub, body, 0)


def _to_lorentz_rowwise_kernel(x_ref, o_ref, *, c, sub_rows):
    """Fallback: one point per row (D not packable to a multiple of 128 lanes)."""
    K = 1.0 / c
    sqrt_k = K ** 0.5
    inv_sqrt_k = 1.0 / sqrt_k
    half_sqrt_k = 0.5 * sqrt_k
    d = x_ref.shape[1]
    n_sub = x_ref.shape[0] // sub_rows

    lane = jax.lax.broadcasted_iota(jnp.int32, (1, d), 1)
    is_time = lane == 0

    def body(i, carry):
        r0 = pl.multiple_of(i * sub_rows, sub_rows)
        rows = pl.ds(r0, sub_rows)
        x = x_ref[rows, :].astype(jnp.float32)
        sq = jnp.where(is_time, 0.0, x * x)                 # proj_tan0 folded in
        nsq = jnp.sum(sq, axis=-1, keepdims=True)
        inv_n = jax.lax.rsqrt(jnp.maximum(nsq, _MIN_NORM * _MIN_NORM))
        n = nsq * inv_n
        theta = n * inv_sqrt_k
        e = jnp.exp(theta)
        ei = jnp.exp(-theta)
        t = half_sqrt_k * (e + ei)
        spatial = ((half_sqrt_k * (e - ei)) * inv_n) * x
        o_ref[rows, :] = jnp.where(is_time, t, spatial).astype(o_ref.dtype)
        return carry

    jax.lax.fori_loop(0, n_sub, body, 0)


def _to_lorentz_pallas(x, c, g, lanes, block_bytes, vmem_limit):
    n_pts, d = x.shape                             # n_pts % g == 0 (guaranteed by caller)
    itemsize = jnp.dtype(x.dtype).itemsize
    rp = n_pts // g                                # packed rows
    xp = x.reshape(rp, lanes)                      # free row-major reshape

    # Sub-tile (compute working set) vs DMA-block (pipeline granularity) rows.
    sub_rows = max(8, (_SUB_TILE_BYTES // (lanes * 4)) // 8 * 8)
    block_rows = max(sub_rows,
                     (block_bytes // (lanes * itemsize)) // sub_rows * sub_rows)
    if rp <= 2 * sub_rows:
        # Small problem: at most two blocks (keeps both v7x TensorCores busy).
        block_rows = rp if rp <= 8 else _round_up(pl.cdiv(rp, 2), 8)
        sub_rows = block_rows
    else:
        # Cap the block so the grid has >= 2 steps; keep sub-tile divisibility.
        block_rows = min(block_rows, _round_up(pl.cdiv(rp, 2), sub_rows))
    grid = (pl.cdiv(rp, block_rows),)              # ragged last block handled by Pallas

    x_spec = pl.BlockSpec((block_rows, lanes), lambda i: (i, 0))
    if lanes % 128 == 0:
        seg = _segment_sum_matrix(d, lanes)
        kernel = functools.partial(_to_lorentz_packed_kernel,
                                   c=float(c), d=d, sub_rows=sub_rows)
        in_specs = [pl.BlockSpec((lanes, lanes), lambda i: (0, 0)), x_spec]
        args = (seg, xp)
    else:
        # TODO(synk): widths with lcm(D,128) > cap keep a masked last-dim layout.
        kernel = functools.partial(_to_lorentz_rowwise_kernel,
                                   c=float(c), sub_rows=sub_rows)
        in_specs = [x_spec]
        args = (xp,)

    out = pl.pallas_call(
        kernel,
        out_shape=jax.ShapeDtypeStruct((rp, lanes), x.dtype),
        grid_spec=pltpu.PrefetchScalarGridSpec(
            num_scalar_prefetch=0,
            grid=grid,
            in_specs=in_specs,
            out_specs=pl.BlockSpec((block_rows, lanes), lambda i: (i, 0)),
        ),
        compiler_params=pltpu.CompilerParams(
            dimension_semantics=("parallel",),
            vmem_limit_bytes=vmem_limit),
    )(*args)
    return out.reshape(n_pts, d)


def to_lorentz(x, c=1.0, *, block_bytes=None, vmem_limit_bytes=None):
    """proj(expmap0(proj_tan0(x, c), c), c) on the Lorentz manifold, x: (N, D)."""
    assert x.ndim == 2, "expected (num_points, dim)"
    # time = sqrt(max(K + K*sinh^2, eps)) == sqrtK*cosh requires K >= eps (c <= 1e7).
    assert float(c) <= 1e7, "kernel assumes curvature c <= 1e7"
    n_pts, d = x.shape
    if block_bytes is None or vmem_limit_bytes is None:
        dflt_block, dflt_vmem = _device_config()
        block_bytes = block_bytes or dflt_block
        vmem_limit_bytes = vmem_limit_bytes or dflt_vmem

    g, lanes = _choose_packing(d)
    n_main = (n_pts // g) * g
    parts = []
    if n_main:
        xm = x if n_main == n_pts else x[:n_main]           # contiguous prefix
        parts.append(_to_lorentz_pallas(xm, c, g, lanes, block_bytes, vmem_limit_bytes))
    if n_main < n_pts:
        # Tiny ragged tail (< g rows): plain JAX instead of a pad+slice round trip.
        parts.append(_to_lorentz_ref(x[n_main:], c).astype(x.dtype))
    return parts[0] if len(parts) == 1 else jnp.concatenate(parts, axis=0)


def _to_lorentz_ref(x, c=1.0):
    """Pure-JAX float32 reference mirroring the PyTorch Hyperboloid chain."""
    xf = x.astype(jnp.float32)
    K = 1.0 / c
    sqrt_k = K ** 0.5
    u = xf.at[:, 0:1].set(0.0)                                   # proj_tan0
    n = jnp.maximum(jnp.linalg.norm(u[:, 1:], axis=1, keepdims=True), _MIN_NORM)
    theta = n / sqrt_k
    res = jnp.concatenate(
        [sqrt_k * jnp.cosh(theta), sqrt_k * jnp.sinh(theta) * u[:, 1:] / n], axis=1)
    y_sq = jnp.sum(res[:, 1:] ** 2, axis=1, keepdims=True)       # proj
    t = jnp.sqrt(jnp.maximum(K + y_sq, _EPS_F32))
    return jnp.concatenate([t, res[:, 1:]], axis=1)


if __name__ == "__main__":
    key = jax.random.PRNGKey(0)
    k1, k2, k3, k4 = jax.random.split(key, 4)
    c = 1.0

    # 1) packed path: D=32 -> 4 points per 128-lane row, 2-step grid
    x1 = jax.random.normal(k1, (64, 32), dtype=jnp.float32)
    out1 = jax.block_until_ready(to_lorentz(x1, c=c))
    assert out1.shape == x1.shape and out1.dtype == x1.dtype
    assert jnp.allclose(out1, _to_lorentz_ref(x1, c=c), atol=1e-5, rtol=1e-5)

    # 2) lcm lane packing (D=48 -> 384 lanes, 8 pts/row) + ragged tail (37 % 8 != 0)
    x2 = jax.random.normal(k2, (37, 48), dtype=jnp.float32)
    out2 = jax.block_until_ready(to_lorentz(x2, c=c))
    assert jnp.allclose(out2, _to_lorentz_ref(x2, c=c), atol=1e-5, rtol=1e-5)

    # 3) rowwise fallback (D=20: lcm(20,128)=640 > cap) with a ragged last block
    x3 = jax.random.normal(k3, (30, 20), dtype=jnp.float32)
    out3 = jax.block_until_ready(to_lorentz(x3, c=c))
    assert jnp.allclose(out3, _to_lorentz_ref(x3, c=c), atol=1e-5, rtol=1e-5)

    # 4) multi-block / multi-sub-tile streaming path + 1-row JAX tail
    x4 = jax.random.normal(k4, (8197, 32), dtype=jnp.float32)
    out4 = jax.block_until_ready(to_lorentz(x4, c=c))
    assert jnp.allclose(out4, _to_lorentz_ref(x4, c=c), atol=1e-5, rtol=1e-5)

    print("KERNEL_OK")
</pallas_src>

<mosaic_0001>
module attributes {stable_mosaic.version = 11 : i64} {
  func.func @_to_lorentz_packed_kernel(%arg0: i32, %arg1: memref<128x128xbf16, #tpu.memory_space<vmem>>, %arg2: memref<8x128xf32, #tpu.memory_space<vmem>>, %arg3: memref<8x128xf32, #tpu.memory_space<vmem>>) attributes {dimension_semantics = [#tpu.dimension_semantics<parallel>], iteration_bounds = array<i64: 2>, scalar_prefetch = 0 : i64, scratch_operands = 0 : i64, tpu.core_type = #tpu.core_type<tc>, window_params = [{pipeline_mode = #tpu.pipeline_mode<synchronous>, transform_indices = @transform_0, window_bounds = array<i64: 128, 128>}, {transform_indices = @transform_1, window_bounds = array<i64: 8, 128>}, {transform_indices = @transform_2, window_bounds = array<i64: 8, 128>}]} {
    %0 = tpu.iota {dimensions = array<i32: 1>} : vector<1x128xi32>
    %c32_i32 = arith.constant 32 : i32
    %c0_i32 = arith.constant 0 : i32
    %1 = arith.cmpi eq, %c32_i32, %c0_i32 : i32
    %c1_i32 = arith.constant 1 : i32
    %2 = arith.select %1, %c1_i32, %c32_i32 : i32
    %3 = vector.broadcast %2 : i32 to vector<1x128xi32>
    %4 = arith.remsi %0, %3 : vector<1x128xi32>
    %c0_i32_0 = arith.constant 0 : i32
    %5 = vector.broadcast %c0_i32_0 : i32 to vector<1x128xi32>
    %6 = arith.cmpi ne, %4, %5 : vector<1x128xi32>
    %c0_i32_1 = arith.constant 0 : i32
    %7 = vector.broadcast %c0_i32_1 : i32 to vector<1x128xi32>
    %8 = arith.cmpi slt, %4, %7 : vector<1x128xi32>
    %c0_i32_2 = arith.constant 0 : i32
    %9 = arith.cmpi slt, %2, %c0_i32_2 : i32
    %10 = vector.broadcast %9 : i1 to vector<1x128xi1>
    %11 = vector.broadcast %10 : vector<1x128xi1> to vector<1x128xi1>
    %12 = arith.xori %8, %11 : vector<1x128xi1>
    %13 = arith.andi %12, %6 : vector<1x128xi1>
    %14 = vector.broadcast %2 : i32 to vector<1x128xi32>
    %15 = arith.addi %4, %14 : vector<1x128xi32>
    %16 = arith.select %13, %15, %4 : vector<1x128xi1>, vector<1x128xi32>
    %c0_i32_3 = arith.constant 0 : i32
    %17 = vector.broadcast %c0_i32_3 : i32 to vector<1x128xi32>
    %18 = arith.cmpi eq, %16, %17 : vector<1x128xi32>
    %c0 = arith.constant 0 : index
    %c0_4 = arith.constant 0 : index
    %19 = vector.load %arg1[%c0, %c0_4] : memref<128x128xbf16, #tpu.memory_space<vmem>>, vector<128x128xbf16>
    %c0_i32_5 = arith.constant 0 : i32
    %c8_i32 = arith.constant 8 : i32
    %20 = arith.muli %c0_i32_5, %c8_i32 : i32
    %21 = tpu.assume_multiple %20, 8 : i32
    %22 = arith.index_cast %21 : i32 to index
    %c0_6 = arith.constant 0 : index
    %23 = vector.load %arg2[%22, %c0_6] : memref<8x128xf32, #tpu.memory_space<vmem>>, vector<8x128xf32>
    %24 = arith.mulf %23, %23 : vector<8x128xf32>
    %25 = arith.truncf %24 : vector<8x128xf32> to vector<8x128xbf16>
    %26 = arith.extf %25 : vector<8x128xbf16> to vector<8x128xf32>
    %27 = arith.subf %24, %26 : vector<8x128xf32>
    %28 = arith.truncf %27 : vector<8x128xf32> to vector<8x128xbf16>
    %29 = arith.extf %28 : vector<8x128xbf16> to vector<8x128xf32>
    %30 = arith.subf %27, %29 : vector<8x128xf32>
    %31 = arith.truncf %30 : vector<8x128xf32> to vector<8x128xbf16>
    %cst = arith.constant dense<0.000000e+00> : vector<8x128xf32>
    %32 = tpu.matmul %25, %19, %cst {dimension_numbers = #tpu.dot_dimension_numbers<[1], [0], [0], [1], [0, 0, 1, 1], [], []>} : vector<8x128xbf16>, vector<128x128xbf16>, vector<8x128xf32> -> vector<8x128xf32>
    %cst_7 = arith.constant dense<0.000000e+00> : vector<8x128xf32>
    %33 = tpu.matmul %28, %19, %cst_7 {dimension_numbers = #tpu.dot_dimension_numbers<[1], [0], [0], [1], [0, 0, 1, 1], [], []>} : vector<8x128xbf16>, vector<128x128xbf16>, vector<8x128xf32> -> vector<8x128xf32>
    %34 = arith.addf %32, %33 : vector<8x128xf32>
    %cst_8 = arith.constant dense<0.000000e+00> : vector<8x128xf32>
    %35 = tpu.matmul %31, %19, %cst_8 {dimension_numbers = #tpu.dot_dimension_numbers<[1], [0], [0], [1], [0, 0, 1, 1], [], []>} : vector<8x128xbf16>, vector<128x128xbf16>, vector<8x128xf32> -> vector<8x128xf32>
    %36 = arith.addf %34, %35 : vector<8x128xf32>
    %cst_9 = arith.constant 1.000000e-30 : f32
    %37 = vector.broadcast %cst_9 : f32 to vector<8x128xf32>
    %38 = arith.maximumf %36, %37 : vector<8x128xf32>
    %39 = math.rsqrt %38 : vector<8x128xf32>
    %40 = arith.mulf %36, %39 : vector<8x128xf32>
    %cst_10 = arith.constant 1.000000e+00 : f32
    %41 = vector.broadcast %cst_10 : f32 to vector<8x128xf32>
    %42 = arith.mulf %40, %41 : vector<8x128xf32>
    %43 = math.exp %42 : vector<8x128xf32>
    %cst_11 = arith.constant 0.000000e+00 : f32
    %44 = vector.broadcast %cst_11 : f32 to vector<8x128xf32>
    %45 = arith.subf %44, %42 : vector<8x128xf32>
    %46 = math.exp %45 : vector<8x128xf32>
    %47 = arith.addf %43, %46 : vector<8x128xf32>
    %cst_12 = arith.constant 5.000000e-01 : f32
    %48 = vector.broadcast %cst_12 : f32 to vector<8x128xf32>
    %49 = arith.mulf %48, %47 : vector<8x128xf32>
    %50 = arith.subf %43, %46 : vector<8x128xf32>
    %cst_13 = arith.constant 5.000000e-01 : f32
    %51 = vector.broadcast %cst_13 : f32 to vector<8x128xf32>
    %52 = arith.mulf %51, %50 : vector<8x128xf32>
    %53 = arith.mulf %52, %39 : vector<8x128xf32>
    %54 = arith.mulf %53, %23 : vector<8x128xf32>
    %55 = vector.shape_cast %18 : vector<1x128xi1> to vector<1x128xi1>
    %56 = vector.broadcast %55 : vector<1x128xi1> to vector<8x128xi1>
    %57 = arith.select %56, %49, %54 : vector<8x128xi1>, vector<8x128xf32>
    %58 = arith.index_cast %21 : i32 to index
    %c0_14 = arith.constant 0 : index
    %59 = vector.load %arg3[%58, %c0_14] : memref<8x128xf32, #tpu.memory_space<vmem>>, vector<8x128xf32>
    tpu.vector_store %arg3[%58, %c0_14], %57 {strides = array<i32>} : memref<8x128xf32, #tpu.memory_space<vmem>>, vector<8x128xf32>,
    %c1_i32_15 = arith.constant 1 : i32
    return
  }
  func.func @transform_0(%arg0: i32) -> (i32, i32) {
    %c0_i32 = arith.constant 0 : i32
    %c0_i32_0 = arith.constant 0 : i32
    %c0_i32_1 = arith.constant 0 : i32
    return %c0_i32, %c0_i32_0 : i32, i32
  }
  func.func @transform_1(%arg0: i32) -> (i32, i32) {
    %c0_i32 = arith.constant 0 : i32
    %c0_i32_0 = arith.constant 0 : i32
    return %arg0, %c0_i32 : i32, i32
  }
  func.func @transform_2(%arg0: i32) -> (i32, i32) {
    %c0_i32 = arith.constant 0 : i32
    %c0_i32_0 = arith.constant 0 : i32
    return %arg0, %c0_i32 : i32, i32
  }
}

</mosaic_0001>

<llo_original>
// kernel: tpu_custom_call.1
$region0: #{tpu_custom_call.1}
  #allocation0 [shape = 'u32[]', space=smem, size = 0x4, offset = 0x4, fixed_abs, tag = 'smem constant byte address 0x4 - core index']
  #allocation1 [shape = 'u32[144,128]{1,0:T(1,128)}', space=vmem, size = 0x12000, scoped, tag = 'internal scratch']
  %s0 = inlined_call_operand.hbm [shape: bf16[128,128], index: 0, kind: input, shape index: {}]
  %s1 = inlined_call_operand.hbm [shape: f32[16,128], index: 1, kind: input, shape index: {}]
  %s2 = inlined_call_operand.hbm [shape: f32[16,128], index: 2, kind: output, shape index: {}]
  %s3 = sld [smem:[#allocation0]]
  $region49: #{tpu_custom_call.1} parent=0
    _
  %s5 = ssub.s32 1, %s3
  %s6 = scalar_select 0, %s5, %s3
  $region1: #{tpu_custom_call.1} parent=0
    #allocation2 [shape = 'u8[32768]{0}', space=vmem, size = 0x8000, scoped, tag = 'input window, operand 0, single buffered']
    #allocation3 [shape = 's32[2]{0}', space=sflag, size = 0x8, scoped, tag = 'scoped memory for tpu_custom_call.1']
    #allocation4 [shape = 's32[2]{0}', space=sflag, size = 0x8, scoped, tag = 'scoped memory for tpu_custom_call.1']
    #allocation5 [shape = 'u8[8192]{0}', space=vmem, size = 0x2000, scoped, tag = 'input window, operand 1']
    #allocation6 [shape = 's32[2]{0}', space=sflag, size = 0x8, scoped, tag = 'scoped memory for tpu_custom_call.1']
    #allocation7 [shape = 'u8[8192]{0}', space=vmem, size = 0x2000, scoped, tag = 'output window, operand 0']
    %7 = vsyncpa [#allocation3], 0
    %8 = vsyncpa [#allocation6], 0
    %s9 = scalar_lea.sflag [#allocation6], 1
    %10 = vsyncpa %s9, 0
    %11 = vsyncpa [#allocation4], 0
    %s12 = scalar_lea.sflag [#allocation4], 1
    %13 = vsyncpa %s12, 0
    loop: start=0, step=1, limit=4
    $region2: #{tpu_custom_call.1} parent=1 // loop_pre_header
      _
    $region3: #{tpu_custom_call.1} parent=1 // loop_header
      %s15 = sphi 0, %s19
      %p16 = scmp.ge.s32.totalorder %s15, 4
      %s23 = sphi 0, %s23
      %s25 = sphi 0, %s23
      %s26 = sphi 0, %s25
      %s40 = sphi 0, %s26
      %s46 = sphi 0, %s48
      %s49 = sphi 0, %s46
      %s50 = sphi 0, %s49
      %s66 = sphi 0, %s50
      %s72 = sphi 0, %s74
      %s75 = sphi 0, %s72
      %s76 = sphi 0, %s75
      %s92 = sphi 0, %s76
    $region4: #{tpu_custom_call.1} parent=1 // loop_header_branch
      %18 = sbr.rel (%p16) target = $region8
    $region5: #{tpu_custom_call.1} parent=1 // loop_body
      %s20 = ssub.s32 %s15, 1
      %s21 = ssub.s32 %s15, 2
      %s22 = sadd.s32 %s15, 1
      %s24 = sadd.s32 %s23, 1
      %p27 = scmp.eq.s32.totalorder %s15, 1
      %p28 = scmp.ne.s32.totalorder %s23, %s25
      %p29 = scmp.eq.s32.totalorder %s15, 0
      %p30 = por %p28, %p29
      %p31 = scmp.ne.s32.totalorder %s23, %s25
      %p32 = scmp.eq.s32.totalorder %s20, 1
      %p33 = por %p31, %p32
      %p34 = scmp.ne.s32.totalorder %s25, %s26
      %p35 = scmp.eq.s32.totalorder %s20, 0
      %p36 = por %p34, %p35
      %p37 = scmp.ne.s32.totalorder %s25, %s26
      %p38 = scmp.eq.s32.totalorder %s21, 1
      %p39 = por %p37, %p38
      %p41 = scmp.ne.s32.totalorder %s26, %s40
      %p42 = scmp.eq.s32.totalorder %s21, 0
      %p43 = por %p41, %p42
      %s44 = ssub.s32 %s15, %s22
      %p45 = scmp.eq.s32.totalorder %s44, 0
      %s47 = sadd.s32 %s46, 1
      %s48 = scalar_select %p45, %s46, %s47
      %p51 = pneg %p45
      %p52 = scmp.eq.s32.totalorder %s15, 1
      %p53 = por %p51, %p52
      %p54 = scmp.ne.s32.totalorder %s46, %s49
      %p55 = scmp.eq.s32.totalorder %s15, 0
      %p56 = por %p54, %p55
      %p57 = scmp.ne.s32.totalorder %s46, %s49
      %p58 = scmp.eq.s32.totalorder %s20, 1
      %p59 = por %p57, %p58
      %p60 = scmp.ne.s32.totalorder %s49, %s50
      %p61 = scmp.eq.s32.totalorder %s20, 0
      %p62 = por %p60, %p61
      %p63 = scmp.ne.s32.totalorder %s49, %s50
      %p64 = scmp.eq.s32.totalorder %s21, 1
      %p65 = por %p63, %p64
      %p67 = scmp.ne.s32.totalorder %s50, %s66
      %p68 = scmp.eq.s32.totalorder %s21, 0
      %p69 = por %p67, %p68
      %s70 = ssub.s32 %s15, %s22
      %p71 = scmp.eq.s32.totalorder %s70, 0
      %s73 = sadd.s32 %s72, 1
      %s74 = scalar_select %p71, %s72, %s73
      %p77 = pneg %p71
      %p78 = scmp.eq.s32.totalorder %s15, 1
      %p79 = por %p77, %p78
      %p80 = scmp.ne.s32.totalorder %s72, %s75
      %p81 = scmp.eq.s32.totalorder %s15, 0
      %p82 = por %p80, %p81
      %p83 = scmp.ne.s32.totalorder %s72, %s75
      %p84 = scmp.eq.s32.totalorder %s20, 1
      %p85 = por %p83, %p84
      %p86 = scmp.ne.s32.totalorder %s75, %s76
      %p87 = scmp.eq.s32.totalorder %s20, 0
      %p88 = por %p86, %p87
      %p89 = scmp.ne.s32.totalorder %s75, %s76
      %p90 = scmp.eq.s32.totalorder %s21, 1
      %p91 = por %p89, %p90
      %p93 = scmp.ne.s32.totalorder %s76, %s92
      %p94 = scmp.eq.s32.totalorder %s21, 0
      %p95 = por %p93, %p94
      %p96 = scmp.le.s32.totalorder 1, %s15
      %p97 = scmp.lt.s32.totalorder %s15, 3
      %p98 = pnand %p96, %p97
      %p99 = pneg %p98
      // Predicated region
      $region9: #{tpu_custom_call.1} parent=5 // pred_check
        _
      $region10: #{tpu_custom_call.1} parent=5 // pred_check_branch
        %101 = sbr.rel (%p98) target = $region12
      $region11: #{tpu_custom_call.1} parent=5 // pred_region
        %s102 = ssub.s32 %s15, 1
        // Predicated region
        $region13: #{tpu_custom_call.1} parent=11 // pred_check
          %p103 = pneg %p36
        $region14: #{tpu_custom_call.1} parent=11 // pred_check_branch
          %105 = sbr.rel (%p103) target = $region16
        $region15: #{tpu_custom_call.1} parent=11 // pred_region
          %s107 = ssub.s32 1024, 1024
          %108 = vsyncadd [#allocation3], %s107
          %s109 = sshll.u32 [#allocation2], 4
          %s110 = int_to_ptr.vmem [resolvable:$true] %s109
          %115 = dma.hbm_to_vmem [thread:$0]  %s0, 1024, %s110, [#allocation3], 64, 64, 4
        $region16: #{tpu_custom_call.1} parent=11 // pred_fallthru
          _
      $region12: #{tpu_custom_call.1} parent=5 // pred_fallthru
        _
      %p116 = scmp.lt.s32.totalorder %s15, 2
      // Predicated region
      $region17: #{tpu_custom_call.1} parent=5 // pred_check
        %p117 = pneg %p116
      $region18: #{tpu_custom_call.1} parent=5 // pred_check_branch
        %119 = sbr.rel (%p117) target = $region20
      $region19: #{tpu_custom_call.1} parent=5 // pred_region
        // Predicated region
        $region21: #{tpu_custom_call.1} parent=19 // pred_check
          %p120 = pneg %p56
        $region22: #{tpu_custom_call.1} parent=19 // pred_check_branch
          %122 = sbr.rel (%p120) target = $region24
        $region23: #{tpu_custom_call.1} parent=19 // pred_region
          %s123 = sand.u32 %s46, 1
          %s124 = scalar_lea.sflag [#allocation6], %s123
          %s125 = sand.u32 %s46, 1
          %s126 = smul.addr %s125, 8
          %s127 = scalar_lea.vmem [#allocation5], %s126
          %s129 = ssub.s32 128, 128
          %130 = vsyncadd %s124, %s129
          %s131 = smul.addr %s15, 128
          %s132 = scalar_lea.hbm %s1, %s131
          %s134 = sshll.u32 %s127, 4
          %s135 = int_to_ptr.vmem [resolvable:$true] %s134
          %137 = dma.hbm_to_vmem [thread:$0]  %s132, 128, %s135, %s124
        $region24: #{tpu_custom_call.1} parent=19 // pred_fallthru
          _
      $region20: #{tpu_custom_call.1} parent=5 // pred_fallthru
        _
      %p138 = scmp.le.s32.totalorder 1, %s15
      %p139 = scmp.lt.s32.totalorder %s15, 3
      %p140 = pnand %p138, %p139
      %p141 = pneg %p140
      // Predicated region
      $region25: #{tpu_custom_call.1} parent=5 // pred_check
        _
      $region26: #{tpu_custom_call.1} parent=5 // pred_check_branch
        %143 = sbr.rel (%p140) target = $region28
      $region27: #{tpu_custom_call.1} parent=5 // pred_region
        %s144 = ssub.s32 %s15, 1
        // Predicated region
        $region29: #{tpu_custom_call.1} parent=27 // pred_check
          %p145 = pneg %p36
        $region30: #{tpu_custom_call.1} parent=27 // pred_check_branch
          %147 = sbr.rel (%p145) target = $region32
        $region31: #{tpu_custom_call.1} parent=27 // pred_region
          %148 = dma.done [#allocation3], 1024
        $region32: #{tpu_custom_call.1} parent=27 // pred_fallthru
          _
        %s149 = sand.u32 %s49, 1
        %s150 = scalar_lea.sflag [#allocation6], %s149
        %s151 = sand.u32 %s49, 1
        %s152 = smul.addr %s151, 8
        %s153 = scalar_lea.vmem [#allocation5], %s152
        // Predicated region
        $region33: #{tpu_custom_call.1} parent=27 // pred_check
          %p154 = pneg %p62
        $region34: #{tpu_custom_call.1} parent=27 // pred_check_branch
          %156 = sbr.rel (%p154) target = $region36
        $region35: #{tpu_custom_call.1} parent=27 // pred_region
          %157 = dma.done %s150, 128
        $region36: #{tpu_custom_call.1} parent=27 // pred_fallthru
          _
        %p158 = pneg %p36
        %p159 = pneg %p33
        %s160 = sand.u32 %s49, 1
        %s161 = scalar_lea.sflag [#allocation6], %s160
        %s162 = sand.u32 %s49, 1
        %s163 = smul.addr %s162, 8
        %s164 = scalar_lea.vmem [#allocation5], %s163
        %p165 = pneg %p62
        %p166 = pneg %p59
        %p167 = pneg %p88
        %p168 = pneg %p85
        %s169 = sand.u32 %s75, 1
        %s170 = scalar_lea.sflag [#allocation4], %s169
        %s171 = sand.u32 %s75, 1
        %s172 = smul.addr %s171, 8
        %s173 = scalar_lea.vmem [#allocation7], %s172
        %v175 = vlaneseq
        %v176 = vand.u32 %v175, 127
        %vm177 = vcmp.lt.s32.totalorder %v176, 0
        %v178 = vsub.s32 0, %v176
        %v179 = vsel %vm177, %v178, %v176
        %v180 = vshrl.u32 %v179, 5
        %v181 = vand.u32 %v179, 31
        %v182 = vsub.s32 0, %v181
        %v183 = vsel %vm177, %v182, %v181
        %vm184 = vcmp.ne.s32.totalorder %v183, 0
        %vm185 = vcmp.lt.s32.totalorder %v183, 0
        %vm186 = vmand %vm185, %vm184
        %v187 = vadd.s32 %v183, 32
        %v188 = vsel %vm186, %v187, %v183
        %vm189 = vcmp.eq.s32.totalorder %v188, 0
        %v190 = vld [vmem:[#allocation2] sm:$0xf]
        %v191 = vld [vmem:[#allocation2 + $0x4] sm:$0xf]
        %v192 = vld [vmem:[#allocation2 + $0x8] sm:$0xf]
        %v193 = vld [vmem:[#allocation2 + $0xc] sm:$0xf]
        %v194 = vld [vmem:[#allocation2 + $0x10] sm:$0xf]
        %v195 = vld [vmem:[#allocation2 + $0x14] sm:$0xf]
        %v196 = vld [vmem:[#allocation2 + $0x18] sm:$0xf]
        %v197 = vld [vmem:[#allocation2 + $0x1c] sm:$0xf]
        %v198 = vld [vmem:[#allocation2 + $0x20] sm:$0xf]
        %v199 = vld [vmem:[#allocation2 + $0x24] sm:$0xf]
        %v200 = vld [vmem:[#allocation2 + $0x28] sm:$0xf]
        %v201 = vld [vmem:[#allocation2 + $0x2c] sm:$0xf]
        %v202 = vld [vmem:[#allocation2 + $0x30] sm:$0xf]
        %v203 = vld [vmem:[#allocation2 + $0x34] sm:$0xf]
        %v204 = vld [vmem:[#allocation2 + $0x38] sm:$0xf]
        %v205 = vld [vmem:[#allocation2 + $0x3c] sm:$0xf]
        %v206 = vld [vmem:[%s153] sm:$0xff]
        %v207 = vmul.f32 %v206, %v206
        %v208 = vpack.c.bf16 %v207, %v207
        %v209 = vunpack.c.l.bf16 %v208
        %v210 = vsub.f32 %v207, %v209
        %v211 = vpack.c.bf16 %v210, %v210
        %v212 = vunpack.c.l.bf16 %v211
        %v213 = vsub.f32 %v210, %v212
        %v214 = vpack.c.bf16 %v213, %v213
        %v231 = vunpack.c.l.b16 %v190
        %v232 = vunpack.c.l.b16 %v191
        %v233 = vunpack.c.l.b16 %v192
        %v234 = vunpack.c.l.b16 %v193
        %v235 = vunpack.c.l.b16 %v194
        %v236 = vunpack.c.l.b16 %v195
        %v237 = vunpack.c.l.b16 %v196
        %v238 = vunpack.c.l.b16 %v197
        %v239 = vunpack.c.l.b16 %v198
        %v240 = vunpack.c.l.b16 %v199
        %v241 = vunpack.c.l.b16 %v200
        %v242 = vunpack.c.l.b16 %v201
        %v243 = vunpack.c.l.b16 %v202
        %v244 = vunpack.c.l.b16 %v203
        %v245 = vunpack.c.l.b16 %v204
        %v246 = vunpack.c.l.b16 %v205
        %v247 = vpack.c.b16 %v232, %v231
        %v248 = vpack.c.b16 %v234, %v233
        %v249 = vpack.c.b16 %v236, %v235
        %v250 = vpack.c.b16 %v238, %v237
        %v251 = vpack.c.b16 %v240, %v239
        %v252 = vpack.c.b16 %v242, %v241
        %v253 = vpack.c.b16 %v244, %v243
        %v254 = vpack.c.b16 %v246, %v245
        %263 = vmatprep.subr.bf16.mxu0 0
        %264 = vmatpush1.bf16.msra.mxu0 %v247
        %265 = vmatprep.subr.bf16.mxu0 0
        %266 = vmatpush1.bf16.msra.mxu0 %v248
        %267 = vmatprep.subr.bf16.mxu0 0
        %268 = vmatpush1.bf16.msra.mxu0 %v249
        %269 = vmatprep.subr.bf16.mxu0 0
        %270 = vmatpush1.bf16.msra.mxu0 %v250
        %271 = vmatprep.subr.bf16.mxu0 0
        %272 = vmatpush1.bf16.msra.mxu0 %v251
        %273 = vmatprep.subr.bf16.mxu0 0
        %274 = vmatpush1.bf16.msra.mxu0 %v252
        %275 = vmatprep.subr.bf16.mxu0 0
        %276 = vmatpush1.bf16.msra.mxu0 %v253
        %277 = vmatprep.subr.bf16.mxu0 0
        %278 = vmatpush1.bf16.msra.mxu0 %v254
        %279 = vmatprep.subr.bf16.mxu0 0
        %280 = vmatpush1.bf16.msra.mxu0 0
        %281 = vmatprep.subr.bf16.mxu0 0
        %282 = vmatpush1.bf16.msra.mxu0 0
        %283 = vmatprep.subr.bf16.mxu0 0
        %284 = vmatpush1.bf16.msra.mxu0 0
        %285 = vmatprep.subr.bf16.mxu0 0
        %286 = vmatpush1.bf16.msra.mxu0 0
        %287 = vmatprep.subr.bf16.mxu0 0
        %288 = vmatpush1.bf16.msra.mxu0 0
        %289 = vmatprep.subr.bf16.mxu0 0
        %290 = vmatpush1.bf16.msra.mxu0 0
        %291 = vmatprep.subr.bf16.mxu0 0
        %292 = vmatpush1.bf16.msra.mxu0 0
        %293 = vmatprep.subr.bf16.mxu0 0
        %294 = vmatpush1.bf16.msra.mxu0 0
        %295 = vmatprep.mubr.bf16.mxu0 0
        %296 = vmatmul.mubr.bf16.gmra.mrb[0].mxu0 %v211
        %v297 = vpop.f32.mrb[0].mxu0
        %v298 = vadd.f32 0.0, %v297
        %v299 = vpop.f32.mrb[0].mxu0
        %v300 = vpop.f32.mrb[0].mxu0
        %v301 = vpop.f32.mrb[0].mxu0
        %302 = vdwg.mxu0
        %303 = vmatprep.subr.bf16.mxu0 0
        %304 = vmatpush1.bf16.msra.mxu0 %v247
        %305 = vmatprep.subr.bf16.mxu0 0
        %306 = vmatpush1.bf16.msra.mxu0 %v248
        %307 = vmatprep.subr.bf16.mxu0 0
        %308 = vmatpush1.bf16.msra.mxu0 %v249
        %309 = vmatprep.subr.bf16.mxu0 0
        %310 = vmatpush1.bf16.msra.mxu0 %v250
        %311 = vmatprep.subr.bf16.mxu0 0
        %312 = vmatpush1.bf16.msra.mxu0 %v251
        %313 = vmatprep.subr.bf16.mxu0 0
        %314 = vmatpush1.bf16.msra.mxu0 %v252
        %315 = vmatprep.subr.bf16.mxu0 0
        %316 = vmatpush1.bf16.msra.mxu0 %v253
        %317 = vmatprep.subr.bf16.mxu0 0
        %318 = vmatpush1.bf16.msra.mxu0 %v254
        %319 = vmatprep.subr.bf16.mxu0 0
        %320 = vmatpush1.bf16.msra.mxu0 0
        %321 = vmatprep.subr.bf16.mxu0 0
        %322 = vmatpush1.bf16.msra.mxu0 0
        %323 = vmatprep.subr.bf16.mxu0 0
        %324 = vmatpush1.bf16.msra.mxu0 0
        %325 = vmatprep.subr.bf16.mxu0 0
        %326 = vmatpush1.bf16.msra.mxu0 0
        %327 = vmatprep.subr.bf16.mxu0 0
        %328 = vmatpush1.bf16.msra.mxu0 0
        %329 = vmatprep.subr.bf16.mxu0 0
        %330 = vmatpush1.bf16.msra.mxu0 0
        %331 = vmatprep.subr.bf16.mxu0 0
        %332 = vmatpush1.bf16.msra.mxu0 0
        %333 = vmatprep.subr.bf16.mxu0 0
        %334 = vmatpush1.bf16.msra.mxu0 0
        %335 = vmatprep.mubr.bf16.mxu0 0
        %336 = vmatmul.mubr.bf16.gmra.mrb[0].mxu0 %v208
        %v337 = vpop.f32.mrb[0].mxu0
        %v338 = vadd.f32 %v298, %v337
        %v339 = vpop.f32.mrb[0].mxu0
        %v340 = vpop.f32.mrb[0].mxu0
        %v341 = vpop.f32.mrb[0].mxu0
        %342 = vdwg.mxu0
        %343 = vmatprep.subr.bf16.mxu0 0
        %344 = vmatpush1.bf16.msra.mxu0 %v247
        %345 = vmatprep.subr.bf16.mxu0 0
        %346 = vmatpush1.bf16.msra.mxu0 %v248
        %347 = vmatprep.subr.bf16.mxu0 0
        %348 = vmatpush1.bf16.msra.mxu0 %v249
        %349 = vmatprep.subr.bf16.mxu0 0
        %350 = vmatpush1.bf16.msra.mxu0 %v250
        %351 = vmatprep.subr.bf16.mxu0 0
        %352 = vmatpush1.bf16.msra.mxu0 %v251
        %353 = vmatprep.subr.bf16.mxu0 0
        %354 = vmatpush1.bf16.msra.mxu0 %v252
        %355 = vmatprep.subr.bf16.mxu0 0
        %356 = vmatpush1.bf16.msra.mxu0 %v253
        %357 = vmatprep.subr.bf16.mxu0 0
        %358 = vmatpush1.bf16.msra.mxu0 %v254
        %359 = vmatprep.subr.bf16.mxu0 0
        %360 = vmatpush1.bf16.msra.mxu0 0
        %361 = vmatprep.subr.bf16.mxu0 0
        %362 = vmatpush1.bf16.msra.mxu0 0
        %363 = vmatprep.subr.bf16.mxu0 0
        %364 = vmatpush1.bf16.msra.mxu0 0
        %365 = vmatprep.subr.bf16.mxu0 0
        %366 = vmatpush1.bf16.msra.mxu0 0
        %367 = vmatprep.subr.bf16.mxu0 0
        %368 = vmatpush1.bf16.msra.mxu0 0
        %369 = vmatprep.subr.bf16.mxu0 0
        %370 = vmatpush1.bf16.msra.mxu0 0
        %371 = vmatprep.subr.bf16.mxu0 0
        %372 = vmatpush1.bf16.msra.mxu0 0
        %373 = vmatprep.subr.bf16.mxu0 0
        %374 = vmatpush1.bf16.msra.mxu0 0
        %375 = vmatprep.mubr.bf16.mxu0 0
        %376 = vmatmul.mubr.bf16.gmra.mrb[0].mxu0 %v214
        %v377 = vpop.f32.mrb[0].mxu0
        %v378 = vadd.f32 0.0, %v377
        %v379 = vpop.f32.mrb[0].mxu0
        %v380 = vpop.f32.mrb[0].mxu0
        %v381 = vpop.f32.mrb[0].mxu0
        %382 = vdwg.mxu0
        %v383 = vadd.f32 %v338, %v378
        %v384 = vmax.f32 %v383, 1e-30
        %v385 = vrsqrt.pop %v384
        %v386 = vmul.f32 %v383, %v385
        %v387 = vmul.f32 %v386, 1.442695
        %v388 = vpow.pop %v387
        %v389 = vsub.f32 0.0, %v386
        %v390 = vmul.f32 %v389, 1.442695
        %v391 = vpow.pop %v390
        %v392 = vadd.f32 %v388, %v391
        %v393 = vmul.f32 %v392, 0.5
        %v394 = vsub.f32 %v388, %v391
        %v395 = vmul.f32 %v394, 0.5
        %v396 = vmul.f32 %v395, %v385
        %v397 = vmul.f32 %v396, %v206
        %v398 = vsel %vm189, 1, 0
        %vm399 = vcmp.eq.s32.totalorder %v398, 1
        %v400 = vsel %vm399, %v393, %v397
        %401 = vst [vmem:[%s173] sm:$0xff] %v400
        %s402 = sand.u32 %s75, 1
        %s403 = scalar_lea.sflag [#allocation4], %s402
        %s404 = sand.u32 %s75, 1
        %s405 = smul.addr %s404, 8
        %s406 = scalar_lea.vmem [#allocation7], %s405
        // Predicated region
        $region37: #{tpu_custom_call.1} parent=27 // pred_check
          %p407 = pneg %p85
        $region38: #{tpu_custom_call.1} parent=27 // pred_check_branch
          %409 = sbr.rel (%p407) target = $region40
        $region39: #{tpu_custom_call.1} parent=27 // pred_region
          %s411 = ssub.s32 128, 128
          %412 = vsyncadd %s403, %s411
          %s413 = smul.addr %s20, 128
          %s414 = scalar_lea.hbm %s2, %s413
          %s416 = sshll.u32 %s406, 4
          %s417 = int_to_ptr.vmem [resolvable:$true] %s416
          %419 = dma.vmem_to_hbm [thread:$0]  %s417, 128, %s414, %s403
        $region40: #{tpu_custom_call.1} parent=27 // pred_fallthru
          _
      $region28: #{tpu_custom_call.1} parent=5 // pred_fallthru
        _
      %p420 = scmp.le.s32.totalorder 2, %s15
      // Predicated region
      $region41: #{tpu_custom_call.1} parent=5 // pred_check
        %p421 = pneg %p420
      $region42: #{tpu_custom_call.1} parent=5 // pred_check_branch
        %423 = sbr.rel (%p421) target = $region44
      $region43: #{tpu_custom_call.1} parent=5 // pred_region
        %s424 = ssub.s32 %s15, 2
        // Predicated region
        $region45: #{tpu_custom_call.1} parent=43 // pred_check
          %p425 = pneg %p91
        $region46: #{tpu_custom_call.1} parent=43 // pred_check_branch
          %427 = sbr.rel (%p425) target = $region48
        $region47: #{tpu_custom_call.1} parent=43 // pred_region
          %s428 = sand.u32 %s76, 1
          %s429 = scalar_lea.sflag [#allocation4], %s428
          %s430 = sand.u32 %s76, 1
          %s431 = smul.addr %s430, 8
          %s432 = scalar_lea.vmem [#allocation7], %s431
          %433 = dma.done %s429, 128
        $region48: #{tpu_custom_call.1} parent=43 // pred_fallthru
          _
      $region44: #{tpu_custom_call.1} parent=5 // pred_fallthru
        _
    $region6: #{tpu_custom_call.1} parent=1 // loop_footer
      %s19 = sadd.s32 1, %s15
    $region7: #{tpu_custom_call.1} parent=1 // loop_footer_branch
      %14 = sbr.rel target = $region3
    $region8: #{tpu_custom_call.1} parent=1 // loop_exit
      _
    %434 = vsyncpa [#allocation3], 1
    %s435 = scalar_lea.sflag [#allocation3], 1
    %436 = vsyncpa %s435, 1
    %437 = vsyncpa [#allocation6], 1
    %s438 = scalar_lea.sflag [#allocation6], 1
    %439 = vsyncpa %s438, 1
    %440 = vsyncpa [#allocation4], 1
    %s441 = scalar_lea.sflag [#allocation4], 1
    %442 = vsyncpa %s441, 1

</llo_original>
